<compile_context>
chip_gen: v6e
topology: v6e:2x2x1
jax: 0.10.0
libtpu: 0.0.40
codegen_flags: <defaults>
</compile_context>

<pallas_src>
import functools

import jax
import jax.numpy as jnp
from jax.experimental import pallas as pl
from jax.experimental.pallas import tpu as pltpu


# ----------------------------------------------------------------------------
# Small helpers
# ----------------------------------------------------------------------------
def _pick_rows_block(rows, max_block):
    """Largest legal row block: full extent if it fits, else a multiple of 8."""
    if rows <= max_block:
        return rows
    return max(8, (max_block // 8) * 8)


def _pack_factor(C):
    """How many length-C softmax rows fit in one 128-lane vreg row."""
    if 0 < C < 128 and 128 % C == 0:     # divisors of 128 are powers of two
        return 128 // C
    return 1


def _segmented_softmax(x, seg_len):
    """Per-segment softmax pieces over contiguous lane groups of `seg_len`.

    Last axis of `x` must be a multiple of `seg_len` (here always 128) and
    `seg_len` a power of two.  Returns (e, z, s) with z = x - seg_max
    (broadcast per segment), e = exp(z), s = per-lane broadcast of the segment
    sum of e.  Uses 4*log2(seg_len) pltpu.roll doubling scans (XLU slot), so
    every lane of the vreg stays live even when the class count < 128.
    """
    axis = x.ndim - 1
    lanes = x.shape[axis]
    lane = jax.lax.broadcasted_iota(jnp.int32, x.shape, axis)
    is_last = lane % seg_len == seg_len - 1

    # Inclusive sliding-window max of width seg_len; only the final lane of
    # each segment holds exactly its segment max (windows never wrap there).
    m = x
    s = 1
    while s < seg_len:
        m = jnp.maximum(m, pltpu.roll(m, shift=s, axis=axis))
        s *= 2
    # Broadcast the segment max back across its segment (reverse scan).
    m = jnp.where(is_last, m, -jnp.inf)
    s = 1
    while s < seg_len:
        m = jnp.maximum(m, pltpu.roll(m, shift=lanes - s, axis=axis))
        s *= 2

    z = x - m
    e = jnp.exp(z)

    # Segment sum of e, same scan + broadcast (exact f32 adds).
    t = e
    s = 1
    while s < seg_len:
        t = t + pltpu.roll(t, shift=s, axis=axis)
        s *= 2
    t = jnp.where(is_last, t, 0.0)
    s = 1
    while s < seg_len:
        t = t + pltpu.roll(t, shift=lanes - s, axis=axis)
        s *= 2
    return e, z, t


# ----------------------------------------------------------------------------
# Kernel 1: ComputeDeltas (win_length=5  =>  N=2, denom = 2*(1^2+2^2) = 10)
#   delta[t] = sum_{n=1..N} n * (x[t+n] - x[t-n]) / denom,  replicate padding.
# Replicate padding is folded in-kernel: pltpu.roll (circular) along the time
# (lane) axis plus iota-based edge fixups -> no padded HBM copy, one launch.
# The (B, n_mfcc, T) MFCC tensor is a few KB, so a single full-tensor block is
# the cheapest schedule.  TODO(synk): tile over B for very long utterances.
# ----------------------------------------------------------------------------
_DELTA_WIN = 5
_DELTA_N = (_DELTA_WIN - 1) // 2                                      # 2
_DELTA_DENOM = float(2 * sum(n * n for n in range(1, _DELTA_N + 1)))  # 10.0


def _deltas_kernel(x_ref, o_ref):
    x = x_ref[...].astype(jnp.float32)                 # (B, n_mfcc, T)
    axis = x.ndim - 1
    T = x.shape[axis]
    t_idx = jax.lax.broadcasted_iota(jnp.int32, x.shape, axis)
    first = x[..., 0:1]
    last = x[..., T - 1:T]
    d = jnp.zeros_like(x)
    for n in range(1, _DELTA_N + 1):                   # static, unrolled
        fwd = jnp.where(t_idx >= T - n, last,
                        pltpu.roll(x, shift=(T - n) % T, axis=axis))   # x[t+n]
        bwd = jnp.where(t_idx < n, first,
                        pltpu.roll(x, shift=n, axis=axis))             # x[t-n]
        d = d + float(n) * (fwd - bwd)
    o_ref[...] = (d / _DELTA_DENOM).astype(o_ref.dtype)


def compute_deltas(x):
    """x: (B, n_mfcc, T) -> deltas, same shape. Matches torchaudio ComputeDeltas."""
    return pl.pallas_call(
        _deltas_kernel,
        out_shape=jax.ShapeDtypeStruct(x.shape, x.dtype),
        in_specs=[pl.BlockSpec(memory_space=pltpu.MemorySpace.VMEM)],
        out_specs=pl.BlockSpec(memory_space=pltpu.MemorySpace.VMEM),
    )(x)


# ----------------------------------------------------------------------------
# Kernel 2: standalone softmax over dim=2 (features_to_posteriors, inference).
# (B, T) collapses into a row axis.  If C < 128 and divides 128, k = 128//C
# rows are packed per 128-lane row (free reshape) and the segmented softmax
# keeps every lane / every store dense.  Otherwise a plain (rows_blk, C)
# kernel is used.  No wrapper pad: pl.cdiv grid + masked boundary block.
# ----------------------------------------------------------------------------
def _softmax_packed_kernel(x_ref, o_ref, *, C):
    x = x_ref[...].astype(jnp.float32)                  # (rows_blk, 128)
    e, _, s = _segmented_softmax(x, C)
    o_ref[...] = (e / s).astype(o_ref.dtype)            # exact division


def _softmax_rows_kernel(x_ref, o_ref):
    x = x_ref[...].astype(jnp.float32)                  # (rows_blk, C)
    m = jnp.max(x, axis=-1, keepdims=True)
    e = jnp.exp(x - m)
    s = jnp.sum(e, axis=-1, keepdims=True)
    o_ref[...] = (e / s).astype(o_ref.dtype)


def features_to_posteriors(logits):
    """logits: (B, T, C) -> softmax over the class axis, squeezed (mirrors module)."""
    B, T, C = logits.shape
    R = B * T
    k = _pack_factor(C)
    if k > 1 and R % k == 0:
        rows, lanes = R // k, k * C
        x2 = logits.reshape(rows, lanes)                 # free reshape, lane-dense
        rows_blk = _pick_rows_block(rows, 1024)
        kernel = functools.partial(_softmax_packed_kernel, C=C)
    else:
        rows, lanes = R, C
        x2 = logits.reshape(rows, lanes)
        max_blk = max(8, min(1024, (2 << 20) // (C * logits.dtype.itemsize)))
        rows_blk = _pick_rows_block(rows, max_blk)
        kernel = _softmax_rows_kernel

    post = pl.pallas_call(
        kernel,
        out_shape=jax.ShapeDtypeStruct((rows, lanes), logits.dtype),
        grid=(pl.cdiv(rows, rows_blk),),
        in_specs=[pl.BlockSpec((rows_blk, lanes), lambda i: (i, 0))],
        out_specs=pl.BlockSpec((rows_blk, lanes), lambda i: (i, 0)),
        compiler_params=pltpu.CompilerParams(
            dimension_semantics=("parallel",),
            vmem_limit_bytes=32 * 1024 * 1024),
    )(x2)
    post = post.reshape(B, T, C)
    return jnp.squeeze(post)   # mirrors .squeeze() in the PyTorch module (rank-fragile)


# ----------------------------------------------------------------------------
# Kernel 3: fused softmax posteriors + length-masked cross-entropy.
#   ce[b, t]  = logsumexp(y[b, t, :]) - y[b, t, label[b, t]]
#   loss_b    = sum_t ce[b, t] * (t < len_b) / len_b      (per-utterance output)
#   loss      = mean_b loss_b                              (wrapper jnp.mean)
# Grid = (B, T_blocks): B is "parallel" (each b owns its own (1,1,1) loss
# block -> no race, megacore-friendly), T is the "arbitrary" reduction axis
# with init at tb == 0.  Labels are int32 indices; one-hot and the length mask
# are built in-register with iota compares.  Posteriors are written in the
# logits' dtype with exact division.
# ----------------------------------------------------------------------------
def _fused_loss_packed_kernel(yp_ref, lbl_ref, lens_ref, post_ref, loss_ref, *, C, k):
    b = pl.program_id(0)
    tb = pl.program_id(1)
    tp_blk = yp_ref.shape[1]

    x = yp_ref[...].astype(jnp.float32)                  # (1, tp_blk, k*C)
    e, z, s_b = _segmented_softmax(x, C)
    post_ref[...] = (e / s_b).astype(post_ref.dtype)

    lane = jax.lax.broadcasted_iota(jnp.int32, x.shape, 2)
    seg = lane // C                                      # which packed frame
    cls = lane - seg * C                                 # local class index
    lbl = lbl_ref[...]                                   # (1, tp_blk, k) int32
    lbl_lane = jnp.zeros(x.shape, jnp.int32)
    for g in range(k):                                   # static, k = 128 // C
        lbl_lane = jnp.where(seg == g, lbl[:, :, g:g + 1], lbl_lane)
    onehot = cls == lbl_lane

    row = jax.lax.broadcasted_iota(jnp.int32, x.shape, 1)
    t_glob = (tb * tp_blk + row) * k + seg               # original frame index
    L = lens_ref[b]
    valid = t_glob < L
    inv_len = 1.0 / jnp.maximum(L, 1).astype(jnp.float32)

    lse_b = jnp.log(s_b)                                 # per-lane segment lse (shifted)
    ce_terms = jnp.where(jnp.logical_and(onehot, valid), (lse_b - z) * inv_len, 0.0)
    contrib = jnp.sum(jnp.sum(ce_terms, axis=2, keepdims=True), axis=1, keepdims=True)

    @pl.when(tb == 0)
    def _():
        loss_ref[...] = jnp.zeros(loss_ref.shape, loss_ref.dtype)

    loss_ref[...] = loss_ref[...] + contrib


def _fused_loss_kernel(y_ref, lbl_ref, lens_ref, post_ref, loss_ref):
    """Fallback (C >= 128 or C does not divide 128): classes stay on the lane axis."""
    b = pl.program_id(0)
    tb = pl.program_id(1)
    t_blk = y_ref.shape[1]

    y = y_ref[...].astype(jnp.float32)                   # (1, t_blk, C)
    m = jnp.max(y, axis=-1, keepdims=True)
    z = y - m
    e = jnp.exp(z)
    s = jnp.sum(e, axis=-1, keepdims=True)
    post_ref[...] = (e / s).astype(post_ref.dtype)

    lse = jnp.log(s)                                     # (1, t_blk, 1)
    cls = jax.lax.broadcasted_iota(jnp.int32, y.shape, 2)
    onehot = cls == lbl_ref[...]                         # labels (1, t_blk, 1)

    t_loc = jax.lax.broadcasted_iota(jnp.int32, y.shape, 1)
    t_glob = tb * t_blk + t_loc
    L = lens_ref[b]
    valid = t_glob < L
    inv_len = 1.0 / jnp.maximum(L, 1).astype(jnp.float32)

    ce_terms = jnp.where(jnp.logical_and(onehot, valid), (lse - z) * inv_len, 0.0)
    contrib = jnp.sum(jnp.sum(ce_terms, axis=2, keepdims=True), axis=1, keepdims=True)

    @pl.when(tb == 0)
    def _():
        loss_ref[...] = jnp.zeros(loss_ref.shape, loss_ref.dtype)

    loss_ref[...] = loss_ref[...] + contrib


def posteriors_and_loss(batch_y, labels, true_lengths):
    """batch_y: (B, T, C) logits; labels: (B, T) int class indices;
    true_lengths: (B,) int.  Returns (posteriors (B,T,C) in batch_y.dtype,
    scalar mean loss)."""
    B, T, C = batch_y.shape
    labels = labels.astype(jnp.int32)
    lens = true_lengths.astype(jnp.int32)
    cp = pltpu.CompilerParams(dimension_semantics=("parallel", "arbitrary"),
                              vmem_limit_bytes=32 * 1024 * 1024)
    k = _pack_factor(C)

    if k > 1 and T % k == 0:
        Tp = T // k
        tp_blk = _pick_rows_block(Tp, 512)
        yp = batch_y.reshape(B, Tp, k * C)               # free, lane-dense
        lblp = labels.reshape(B, Tp, k)
        kernel = functools.partial(_fused_loss_packed_kernel, C=C, k=k)
        post_p, loss_parts = pl.pallas_call(
            kernel,
            out_shape=(jax.ShapeDtypeStruct((B, Tp, k * C), batch_y.dtype),
                       jax.ShapeDtypeStruct((B, 1, 1), jnp.float32)),
            grid=(B, pl.cdiv(Tp, tp_blk)),
            in_specs=[pl.BlockSpec((1, tp_blk, k * C), lambda b, t: (b, t, 0)),
                      pl.BlockSpec((1, tp_blk, k), lambda b, t: (b, t, 0)),
                      pl.BlockSpec(memory_space=pltpu.MemorySpace.SMEM)],
            out_specs=(pl.BlockSpec((1, tp_blk, k * C), lambda b, t: (b, t, 0)),
                       pl.BlockSpec((1, 1, 1), lambda b, t: (b, 0, 0))),
            compiler_params=cp,
        )(yp, lblp, lens)
        post = post_p.reshape(B, T, C)
    else:
        max_blk = max(8, min(512, (1 << 20) // (C * batch_y.dtype.itemsize)))
        t_blk = _pick_rows_block(T, max_blk)
        post, loss_parts = pl.pallas_call(
            _fused_loss_kernel,
            out_shape=(jax.ShapeDtypeStruct((B, T, C), batch_y.dtype),
                       jax.ShapeDtypeStruct((B, 1, 1), jnp.float32)),
            grid=(B, pl.cdiv(T, t_blk)),
            in_specs=[pl.BlockSpec((1, t_blk, C), lambda b, t: (b, t, 0)),
                      pl.BlockSpec((1, t_blk, 1), lambda b, t: (b, t, 0)),
                      pl.BlockSpec(memory_space=pltpu.MemorySpace.SMEM)],
            out_specs=(pl.BlockSpec((1, t_blk, C), lambda b, t: (b, t, 0)),
                       pl.BlockSpec((1, 1, 1), lambda b, t: (b, 0, 0))),
            compiler_params=cp,
        )(batch_y, labels[..., None], lens)

    return post, jnp.mean(loss_parts)


def compute_loss_batch(batch_y, batch_ref_label, true_lengths):
    """Module-compatible shim: batch_ref_label may be (B,T) int indices or the
    module's (B,T,C) label scores (argmax'd here, like the PyTorch code).
    Prefer passing indices / posteriors_and_loss directly to avoid the extra
    (B,T,C) HBM pass the argmax costs."""
    if batch_ref_label.ndim == 3:
        label_T = batch_ref_label.shape[1]
        labels = jnp.argmax(batch_ref_label, axis=2)
    else:
        label_T = batch_ref_label.shape[1]
        labels = batch_ref_label
    if label_T != batch_y.shape[1]:
        diff = batch_y.shape[1] - label_T
        if diff > 1:
            raise ValueError('Frame difference larger than 1!')
        batch_y = batch_y[:, :label_T, :]
    # TODO(synk): the `important_indices` branch of the PyTorch method is
    # host-side glue and is not implemented.
    return posteriors_and_loss(batch_y, labels, true_lengths)[1]


# ----------------------------------------------------------------------------
# Pure-JAX references for verification
# ----------------------------------------------------------------------------
def _ref_deltas(x):
    n = _DELTA_N
    xp = jnp.pad(x, ((0, 0), (0, 0), (n, n)), mode="edge")
    T = x.shape[-1]
    d = sum(float(i) * (xp[..., n + i:n + i + T] - xp[..., n - i:n - i + T])
            for i in range(1, n + 1))
    return d / _DELTA_DENOM


def _ref_softmax(x):
    return jax.nn.softmax(x, axis=2)


def _ref_loss(y, labels, lens):
    logp = jax.nn.log_softmax(y, axis=2)
    ce = -jnp.take_along_axis(logp, labels[..., None], axis=2)[..., 0]
    T = y.shape[1]
    mask = jnp.where(jnp.arange(T)[None, :] < lens[:, None],
                     1.0 / jnp.maximum(lens, 1)[:, None].astype(jnp.float32), 0.0)
    return jnp.mean(jnp.sum(ce * mask, axis=1))


if __name__ == "__main__":
    key = jax.random.PRNGKey(0)
    B, T, C = 2, 8, 32      # batch, frames, HMM states (forward output width)
    n_mfcc = 13             # feature_parameters['num_ceps']

    k1, k2, k3, k4 = jax.random.split(key, 4)
    feats = jax.random.normal(k1, (B, n_mfcc, T), dtype=jnp.float32)   # MFCC-like
    logits = jax.random.normal(k2, (B, T, C), dtype=jnp.float32)       # forward() output
    labels = jax.random.randint(k3, (B, T), 0, C).astype(jnp.int32)    # target states
    ref_onehot = jax.nn.one_hot(labels, C, dtype=jnp.float32)          # module-style labels
    true_lengths = jnp.array([T, T - 2], dtype=jnp.int32)

    # --- lane-packed fast path (C = 32 divides 128) ---
    deltas = compute_deltas(feats)
    posteriors = features_to_posteriors(logits)
    post_fused, loss = posteriors_and_loss(logits, labels, true_lengths)
    loss_compat = compute_loss_batch(logits, ref_onehot, true_lengths)

    # --- unpacked fallback path (C = 48 does not divide 128) ---
    C2 = 48
    logits2 = jax.random.normal(k4, (B, T, C2), dtype=jnp.float32)
    labels2 = labels % C2
    posteriors2 = features_to_posteriors(logits2)
    post_fused2, loss2 = posteriors_and_loss(logits2, labels2, true_lengths)

    jax.block_until_ready((deltas, posteriors, post_fused, loss, loss_compat,
                           posteriors2, post_fused2, loss2))

    assert jnp.allclose(deltas, _ref_deltas(feats), atol=1e-5), "deltas mismatch"
    assert jnp.allclose(posteriors, _ref_softmax(logits), atol=1e-4), "softmax mismatch"
    assert jnp.allclose(post_fused, _ref_softmax(logits), atol=1e-4), "fused softmax mismatch"
    assert jnp.allclose(loss, _ref_loss(logits, labels, true_lengths),
                        atol=1e-3), "loss mismatch"
    assert jnp.allclose(loss_compat, loss, atol=1e-6), "one-hot shim mismatch"
    assert jnp.allclose(posteriors2, _ref_softmax(logits2), atol=1e-4), "fallback softmax mismatch"
    assert jnp.allclose(post_fused2, _ref_softmax(logits2), atol=1e-4), "fallback fused mismatch"
    assert jnp.allclose(loss2, _ref_loss(logits2, labels2, true_lengths),
                        atol=1e-3), "fallback loss mismatch"

    print("KERNEL_OK")
</pallas_src>

<mosaic_0001>
module attributes {stable_mosaic.version = 11 : i64} {
  func.func @_deltas_kernel(%arg0: memref<2x13x8xf32, #tpu.memory_space<vmem>>, %arg1: memref<2x13x8xf32, #tpu.memory_space<vmem>>) attributes {dimension_semantics = [], scalar_prefetch = 0 : i64, scratch_operands = 0 : i64, tpu.core_type = #tpu.core_type<tc>} {
    %c0 = arith.constant 0 : index
    %c0_0 = arith.constant 0 : index
    %c0_1 = arith.constant 0 : index
    %0 = vector.load %arg0[%c0, %c0_0, %c0_1] : memref<2x13x8xf32, #tpu.memory_space<vmem>>, vector<2x13x8xf32>
    %1 = tpu.iota {dimensions = array<i32: 2>} : vector<2x13x8xi32>
    %2 = vector.extract_strided_slice %0 {offsets = [0, 0, 0], sizes = [2, 13, 1], strides = [1, 1, 1]} : vector<2x13x8xf32> to vector<2x13x1xf32>
    %3 = vector.extract_strided_slice %0 {offsets = [0, 0, 7], sizes = [2, 13, 1], strides = [1, 1, 1]} : vector<2x13x8xf32> to vector<2x13x1xf32>
    %cst = arith.constant 0.000000e+00 : f32
    %4 = vector.broadcast %cst : f32 to vector<2x13x8xf32>
    %c7_i32 = arith.constant 7 : i32
    %5 = vector.broadcast %c7_i32 : i32 to vector<2x13x8xi32>
    %6 = arith.cmpi sge, %1, %5 : vector<2x13x8xi32>
    %c7_i32_2 = arith.constant 7 : i32
    %7 = tpu.dynamic_rotate %0 by %c7_i32_2 dim 2 : vector<2x13x8xf32>, i32 -> vector<2x13x8xf32>
    %8 = vector.shape_cast %3 : vector<2x13x1xf32> to vector<2x13x1xf32>
    %9 = vector.broadcast %8 : vector<2x13x1xf32> to vector<2x13x8xf32>
    %10 = arith.select %6, %9, %7 : vector<2x13x8xi1>, vector<2x13x8xf32>
    %c1_i32 = arith.constant 1 : i32
    %11 = vector.broadcast %c1_i32 : i32 to vector<2x13x8xi32>
    %12 = arith.cmpi slt, %1, %11 : vector<2x13x8xi32>
    %c1_i32_3 = arith.constant 1 : i32
    %13 = tpu.dynamic_rotate %0 by %c1_i32_3 dim 2 : vector<2x13x8xf32>, i32 -> vector<2x13x8xf32>
    %14 = vector.shape_cast %2 : vector<2x13x1xf32> to vector<2x13x1xf32>
    %15 = vector.broadcast %14 : vector<2x13x1xf32> to vector<2x13x8xf32>
    %16 = arith.select %12, %15, %13 : vector<2x13x8xi1>, vector<2x13x8xf32>
    %17 = arith.subf %10, %16 : vector<2x13x8xf32>
    %cst_4 = arith.constant 1.000000e+00 : f32
    %18 = vector.broadcast %cst_4 : f32 to vector<2x13x8xf32>
    %19 = arith.mulf %18, %17 : vector<2x13x8xf32>
    %20 = arith.addf %4, %19 : vector<2x13x8xf32>
    %c6_i32 = arith.constant 6 : i32
    %21 = vector.broadcast %c6_i32 : i32 to vector<2x13x8xi32>
    %22 = arith.cmpi sge, %1, %21 : vector<2x13x8xi32>
    %c6_i32_5 = arith.constant 6 : i32
    %23 = tpu.dynamic_rotate %0 by %c6_i32_5 dim 2 : vector<2x13x8xf32>, i32 -> vector<2x13x8xf32>
    %24 = vector.shape_cast %3 : vector<2x13x1xf32> to vector<2x13x1xf32>
    %25 = vector.broadcast %24 : vector<2x13x1xf32> to vector<2x13x8xf32>
    %26 = arith.select %22, %25, %23 : vector<2x13x8xi1>, vector<2x13x8xf32>
    %c2_i32 = arith.constant 2 : i32
    %27 = vector.broadcast %c2_i32 : i32 to vector<2x13x8xi32>
    %28 = arith.cmpi slt, %1, %27 : vector<2x13x8xi32>
    %c2_i32_6 = arith.constant 2 : i32
    %29 = tpu.dynamic_rotate %0 by %c2_i32_6 dim 2 : vector<2x13x8xf32>, i32 -> vector<2x13x8xf32>
    %30 = vector.shape_cast %2 : vector<2x13x1xf32> to vector<2x13x1xf32>
    %31 = vector.broadcast %30 : vector<2x13x1xf32> to vector<2x13x8xf32>
    %32 = arith.select %28, %31, %29 : vector<2x13x8xi1>, vector<2x13x8xf32>
    %33 = arith.subf %26, %32 : vector<2x13x8xf32>
    %cst_7 = arith.constant 2.000000e+00 : f32
    %34 = vector.broadcast %cst_7 : f32 to vector<2x13x8xf32>
    %35 = arith.mulf %34, %33 : vector<2x13x8xf32>
    %36 = arith.addf %20, %35 : vector<2x13x8xf32>
    %cst_8 = arith.constant 1.000000e+01 : f32
    %37 = vector.broadcast %cst_8 : f32 to vector<2x13x8xf32>
    %38 = arith.divf %36, %37 : vector<2x13x8xf32>
    %c0_9 = arith.constant 0 : index
    %c0_10 = arith.constant 0 : index
    %c0_11 = arith.constant 0 : index
    %39 = vector.load %arg1[%c0_9, %c0_10, %c0_11] : memref<2x13x8xf32, #tpu.memory_space<vmem>>, vector<2x13x8xf32>
    tpu.vector_store %arg1[%c0_9, %c0_10, %c0_11], %38 {strides = array<i32>} : memref<2x13x8xf32, #tpu.memory_space<vmem>>, vector<2x13x8xf32>,
    return
  }
}

</mosaic_0001>

<llo_original>
// kernel: tpu_custom_call.1
$region0: #{tpu_custom_call.1}
  #allocation0 [shape = 'u32[]', space=smem, size = 0x4, offset = 0x4, fixed_abs, tag = 'smem constant byte address 0x4 - core index']
  #allocation1 [shape = 'u32[144,128]{1,0:T(1,128)}', space=vmem, size = 0x12000, scoped, tag = 'internal scratch']
  %s0 = inlined_call_operand.vmem [shape: f32[2,13,8], index: 0, kind: input, shape index: {}]
  %s1 = inlined_call_operand.vmem [shape: f32[2,13,8], index: 1, kind: output, shape index: {}]
  %s2 = sld [smem:[#allocation0]]
  $region14: #{tpu_custom_call.1} parent=0
    _
  %s4 = ssub.s32 1, %s2
  %s5 = scalar_select 0, %s4, %s2
  // Predicated region
  $region2: #{tpu_custom_call.1} parent=0 // pred_check
    _
  $region3: #{tpu_custom_call.1} parent=0 // pred_check_branch
    %7 = sbr.rel (0) target = $region5
  $region4: #{tpu_custom_call.1} parent=0 // pred_region
    _
  $region5: #{tpu_custom_call.1} parent=0 // pred_fallthru
    _
  %v8 = vld [vmem:[%s0] sm:$0xff]
  %v9 = vld [vmem:[%s0 + $0x8] sm:$0x1f]
  %v10 = vld [vmem:[%s0 + $0x10] sm:$0xff]
  %v11 = vld [vmem:[%s0 + $0x18] sm:$0x1f]
  %v12 = vlaneseq
  %v13 = vand.u32 %v12, 127
  %vm14 = vcmp.ge.s32.totalorder %v13, 7
  %vm15 = vcmask 1047616
  %16 = vrot.lane.b32.xlu0 %v8, 8
  %v17 = vpop.permute.xlu0 %16
  %v18 = vsel %vm15, %v17, %v8
  %19 = vrot.lane.b32.xlu0 %v9, 8
  %v20 = vpop.permute.xlu0 %19
  %v21 = vsel %vm15, %v20, %v9
  %22 = vrot.lane.b32.xlu0 %v10, 8
  %v23 = vpop.permute.xlu0 %22
  %v24 = vsel %vm15, %v23, %v10
  %25 = vrot.lane.b32.xlu0 %v11, 8
  %v26 = vpop.permute.xlu0 %25
  %v27 = vsel %vm15, %v26, %v11
  %28 = vrot.lane.b32.xlu0 %v18, 8
  %v29 = vpop.permute.xlu0 %28
  %30 = vrot.lane.b32.xlu0 %v21, 8
  %v31 = vpop.permute.xlu0 %30
  %32 = vrot.lane.b32.xlu0 %v24, 8
  %v33 = vpop.permute.xlu0 %32
  %34 = vrot.lane.b32.xlu0 %v27, 8
  %v35 = vpop.permute.xlu0 %34
  %v36 = vsel %vm15, %v29, %v8
  %v37 = vsel %vm15, %v31, %v9
  %v38 = vsel %vm15, %v33, %v10
  %v39 = vsel %vm15, %v35, %v11
  %41 = vset.pattern.permute.xlu0 7
  %42 = vperm.xlu0 %41, %v8
  %v43 = vpop.permute.xlu0 %42
  %46 = vset.pattern.permute.xlu0 7
  %47 = vperm.xlu0 %46, %v9
  %v48 = vpop.permute.xlu0 %47
  %51 = vset.pattern.permute.xlu0 7
  %52 = vperm.xlu0 %51, %v10
  %v53 = vpop.permute.xlu0 %52
  %56 = vset.pattern.permute.xlu0 7
  %57 = vperm.xlu0 %56, %v11
  %v58 = vpop.permute.xlu0 %57
  %64 = vrot.lane.b32.xlu0 %v36, 127
  %v65 = vpop.permute.xlu0 %64
  %66 = vrot.lane.b32.xlu0 %v37, 127
  %v67 = vpop.permute.xlu0 %66
  %68 = vrot.lane.b32.xlu0 %v38, 127
  %v69 = vpop.permute.xlu0 %68
  %70 = vrot.lane.b32.xlu0 %v39, 127
  %v71 = vpop.permute.xlu0 %70
  %v76 = vsel %vm14, %v43, %v65
  %v77 = vsel %vm14, %v48, %v67
  %v78 = vsel %vm14, %v53, %v69
  %v79 = vsel %vm14, %v58, %v71
  %vm80 = vcmp.lt.s32.totalorder %v13, 1
  %81 = vset.pattern.permute.xlu0 0
  %82 = vperm.xlu0 %81, %v8
  %v83 = vpop.permute.xlu0 %82
  %85 = vset.pattern.permute.xlu0 0
  %86 = vperm.xlu0 %85, %v9
  %v87 = vpop.permute.xlu0 %86
  %89 = vset.pattern.permute.xlu0 0
  %90 = vperm.xlu0 %89, %v10
  %v91 = vpop.permute.xlu0 %90
  %93 = vset.pattern.permute.xlu0 0
  %94 = vperm.xlu0 %93, %v11
  %v95 = vpop.permute.xlu0 %94
  %97 = vrot.lane.b32.xlu0 %v36, 121
  %v98 = vpop.permute.xlu0 %97
  %99 = vrot.lane.b32.xlu0 %v37, 121
  %v100 = vpop.permute.xlu0 %99
  %101 = vrot.lane.b32.xlu0 %v38, 121
  %v102 = vpop.permute.xlu0 %101
  %103 = vrot.lane.b32.xlu0 %v39, 121
  %v104 = vpop.permute.xlu0 %103
  %v109 = vsel %vm80, %v83, %v98
  %v110 = vsel %vm80, %v87, %v100
  %v111 = vsel %vm80, %v91, %v102
  %v112 = vsel %vm80, %v95, %v104
  %v113 = vsub.f32 %v76, %v109
  %v114 = vsub.f32 %v77, %v110
  %v115 = vsub.f32 %v78, %v111
  %v116 = vsub.f32 %v79, %v112
  %v117 = vadd.f32 %v113, 0.0
  %v118 = vadd.f32 %v114, 0.0
  %v119 = vadd.f32 %v115, 0.0
  %v120 = vadd.f32 %v116, 0.0
  %vm121 = vcmp.ge.s32.totalorder %v13, 6
  %122 = vrot.lane.b32.xlu0 %v36, 126
  %v123 = vpop.permute.xlu0 %122
  %124 = vrot.lane.b32.xlu0 %v37, 126
  %v125 = vpop.permute.xlu0 %124
  %126 = vrot.lane.b32.xlu0 %v38, 126
  %v127 = vpop.permute.xlu0 %126
  %128 = vrot.lane.b32.xlu0 %v39, 126
  %v129 = vpop.permute.xlu0 %128
  %v134 = vsel %vm121, %v43, %v123
  %v135 = vsel %vm121, %v48, %v125
  %v136 = vsel %vm121, %v53, %v127
  %v137 = vsel %vm121, %v58, %v129
  %vm138 = vcmp.lt.s32.totalorder %v13, 2
  %139 = vrot.lane.b32.xlu0 %v36, 122
  %v140 = vpop.permute.xlu0 %139
  %141 = vrot.lane.b32.xlu0 %v37, 122
  %v142 = vpop.permute.xlu0 %141
  %143 = vrot.lane.b32.xlu0 %v38, 122
  %v144 = vpop.permute.xlu0 %143
  %145 = vrot.lane.b32.xlu0 %v39, 122
  %v146 = vpop.permute.xlu0 %145
  %v151 = vsel %vm138, %v83, %v140
  %v152 = vsel %vm138, %v87, %v142
  %v153 = vsel %vm138, %v91, %v144
  %v154 = vsel %vm138, %v95, %v146
  %v155 = vsub.f32 %v134, %v151
  %v156 = vsub.f32 %v135, %v152
  %v157 = vsub.f32 %v136, %v153
  %v158 = vsub.f32 %v137, %v154
  %v159 = vmul.f32 %v155, 2.0
  %v160 = vmul.f32 %v156, 2.0
  %v161 = vmul.f32 %v157, 2.0
  %v162 = vmul.f32 %v158, 2.0
  %v163 = vadd.f32 %v117, %v159
  %v164 = vadd.f32 %v118, %v160
  %v165 = vadd.f32 %v119, %v161
  %v166 = vadd.f32 %v120, %v162
  %v167 = vrcp.pop 10.0
  %v168 = vmul.f32 %v163, %v167
  %v169 = vmul.f32 %v164, %v167
  %v170 = vmul.f32 %v165, %v167
  %v171 = vmul.f32 %v166, %v167
  %vm172 = vcmask 64512
  %173 = vst.msk [vmem:[%s1] sm:$0xff] %vm172, %v168
  %vm174 = vcmask 61440
  %175 = vst.msk [vmem:[%s1 + $0x8] sm:$0x1f] %vm174, %v169
  %176 = vst.msk [vmem:[%s1 + $0x10] sm:$0xff] %vm172, %v170
  %177 = vst.msk [vmem:[%s1 + $0x18] sm:$0x1f] %vm174, %v171
  // Predicated region
  $region6: #{tpu_custom_call.1} parent=0 // pred_check
    _
  $region7: #{tpu_custom_call.1} parent=0 // pred_check_branch
    %179 = sbr.rel (0) target = $region9
  $region8: #{tpu_custom_call.1} parent=0 // pred_region
    _
  $region9: #{tpu_custom_call.1} parent=0 // pred_fallthru
    _
  // Predicated region
  $region10: #{tpu_custom_call.1} parent=0 // pred_check
    _
  $region11: #{tpu_custom_call.1} parent=0 // pred_check_branch
    %181 = sbr.rel (0) target = $region13
  $region12: #{tpu_custom_call.1} parent=0 // pred_region
    _
  $region13: #{tpu_custom_call.1} parent=0 // pred_fallthru
    _

</llo_original>
